<compile_context>
chip_gen: v7x
topology: tpu7x:2x2x1
jax: 0.10.0
libtpu: 0.0.40
codegen_flags: <defaults>
</compile_context>

<pallas_src>
import jax
import jax.numpy as jnp
from jax.experimental import pallas as pl
from jax.experimental.pallas import tpu as pltpu


_CHUNK_BYTES = 8 * 1024 * 1024   # target ~8 MiB per DMA chunk
_MAX_CHUNKS = 4                  # at most a handful of concurrent DMAs


def _pick_lanes(total: int) -> int:
    """Largest lane-dense width (multiple of 128) that divides the element count."""
    for cand in (1024, 512, 256, 128):
        if total % cand == 0:
            return cand
    return 0


def _make_copy_kernel(bounds):
    """Build an HBM->HBM copy kernel over static row chunks bounds=((start, size), ...)."""
    n = len(bounds)

    def kernel(x_hbm, o_hbm):
        def body(sems):
            copies = []
            if n == 1:
                # Whole-array copy: no slicing, no alignment concerns.
                cp = pltpu.make_async_copy(x_hbm, o_hbm, sems.at[0])
                cp.start()
                copies.append(cp)
            else:
                # Start every chunk DMA first (concurrent engines), then wait all.
                for c, (start, size) in enumerate(bounds):
                    cp = pltpu.make_async_copy(
                        x_hbm.at[pl.ds(start, size)],
                        o_hbm.at[pl.ds(start, size)],
                        sems.at[c],
                    )
                    cp.start()
                    copies.append(cp)
            for cp in copies:
                cp.wait()

        pl.run_scoped(body, pltpu.SemaphoreType.DMA((n,)))

    return kernel


def prenet_forward(x: jax.Array) -> jax.Array:
    """PReNet.forward(x) == x, materialized as a direct HBM->HBM DMA copy."""
    orig_shape = x.shape
    total = int(x.size)
    if total == 0:
        return x

    itemsize = jnp.dtype(x.dtype).itemsize
    total_bytes = total * itemsize

    # Flatten to a 2-D slab.  Prefer a lane-dense factorization (nice DMA
    # granularity); otherwise keep the original last dim — the DMA path has
    # no (8,128) block constraint, so any shape works.
    lanes = _pick_lanes(total)
    if lanes == 0:
        lanes = orig_shape[-1] if len(orig_shape) >= 2 else total
    rows = total // lanes
    x2d = x.reshape(rows, lanes)

    # Split the row range into a few large, 8-row-aligned chunks so several
    # DMA engines can run concurrently on big inputs; tiny inputs get one DMA.
    want_chunks = max(1, min(_MAX_CHUNKS, pl.cdiv(total_bytes, _CHUNK_BYTES)))
    chunk_rows = max(8, ((pl.cdiv(rows, want_chunks) + 7) // 8) * 8)
    bounds = []
    start = 0
    while start < rows:
        size = min(chunk_rows, rows - start)
        bounds.append((start, size))
        start += size

    out2d = pl.pallas_call(
        _make_copy_kernel(tuple(bounds)),
        out_shape=jax.ShapeDtypeStruct((rows, lanes), x.dtype),
        in_specs=[pl.BlockSpec(memory_space=pl.ANY)],   # raw HBM ref, no auto-DMA
        out_specs=pl.BlockSpec(memory_space=pl.ANY),    # written only via DMA
        cost_estimate=pl.CostEstimate(
            flops=0, transcendentals=0, bytes_accessed=2 * total_bytes),
    )(x2d)
    return out2d.reshape(orig_shape)


if __name__ == "__main__":
    key = jax.random.PRNGKey(0)

    # Small NCHW input consistent with an image-deraining model (single-DMA path).
    x = jax.random.normal(key, (2, 4, 16, 16), dtype=jnp.float32)
    y = jax.block_until_ready(prenet_forward(x))
    assert y.shape == x.shape and y.dtype == x.dtype
    assert bool(jnp.all(y == x))

    # Awkward, non-128-divisible shape: exercises the fallback slab layout.
    x_odd = jax.random.normal(key, (2, 3, 17, 19), dtype=jnp.float32)
    y_odd = jax.block_until_ready(prenet_forward(x_odd))
    assert y_odd.shape == x_odd.shape and y_odd.dtype == x_odd.dtype
    assert bool(jnp.all(y_odd == x_odd))

    # Larger input (~9 MiB): exercises the multi-chunk concurrent-DMA path.
    x_big = jax.random.normal(key, (8, 8, 192, 192), dtype=jnp.float32)
    y_big = jax.block_until_ready(prenet_forward(x_big))
    assert y_big.shape == x_big.shape and y_big.dtype == x_big.dtype
    assert bool(jnp.all(y_big == x_big))

    print("KERNEL_OK")
</pallas_src>

<mosaic_0001>
module attributes {stable_mosaic.version = 11 : i64} {
  func.func @kernel(%arg0: memref<2x1024xf32, #tpu.memory_space<any>>, %arg1: memref<2x1024xf32, #tpu.memory_space<any>>) attributes {dimension_semantics = [], scalar_prefetch = 0 : i64, scratch_operands = 0 : i64, tpu.core_type = #tpu.core_type<tc>} {
    "tpu.region"() ({
      %0 = tpu.sem_alloc : memref<1x!tpu.dma_semaphore, #tpu.memory_space<semaphore_mem>>
      %c0_i32 = arith.constant 0 : i32
      %1 = tpu.memref_slice %0[%c0_i32] : memref<1x!tpu.dma_semaphore, #tpu.memory_space<semaphore_mem>> -> memref<1x!tpu.dma_semaphore, #tpu.memory_space<semaphore_mem>>
      %2 = tpu.memref_squeeze %1 : memref<1x!tpu.dma_semaphore, #tpu.memory_space<semaphore_mem>> -> memref<!tpu.dma_semaphore, #tpu.memory_space<semaphore_mem>>
      tpu.enqueue_dma source(%arg0 : memref<2x1024xf32, #tpu.memory_space<any>>) target(%arg1 : memref<2x1024xf32, #tpu.memory_space<any>>) target_semaphore(%2 : memref<!tpu.dma_semaphore, #tpu.memory_space<semaphore_mem>>)
      %c0_i32_0 = arith.constant 0 : i32
      %3 = tpu.memref_slice %0[%c0_i32_0] : memref<1x!tpu.dma_semaphore, #tpu.memory_space<semaphore_mem>> -> memref<1x!tpu.dma_semaphore, #tpu.memory_space<semaphore_mem>>
      %4 = tpu.memref_squeeze %3 : memref<1x!tpu.dma_semaphore, #tpu.memory_space<semaphore_mem>> -> memref<!tpu.dma_semaphore, #tpu.memory_space<semaphore_mem>>
      tpu.wait_dma2 semaphore(%4 : memref<!tpu.dma_semaphore, #tpu.memory_space<semaphore_mem>>) src(%arg0 : memref<2x1024xf32, #tpu.memory_space<any>>) dst(%arg1 : memref<2x1024xf32, #tpu.memory_space<any>>)
      tpu.yield
    }) : () -> ()
    return
  }
}

</mosaic_0001>

<llo_original>
// kernel: tpu_custom_call.1
$region0: #{tpu_custom_call.1}
  #allocation0 [shape = 'u32[]', space=smem, size = 0x4, offset = 0x4, fixed_abs, tag = 'smem constant byte address 0x4 - core index']
  #allocation1 [shape = 'u32[144,128]{1,0:T(1,128)}', space=vmem, size = 0x12000, scoped, tag = 'internal scratch']
  #allocation3 [shape = 's32[]', space=sflag, size = 0x4, offset = 0, fixed_abs, tag = 'sflag constant byte address 0x0 - dummy sync flag']
  #allocation4 [shape = 'u32[0]{0}', space=smem, size = 0, offset = 0, fixed_abs, tag = 'smem constant byte address 0x0 - null']
  %s0 = inlined_call_operand.hbm [shape: f32[2,1024], index: 0, kind: input, shape index: {}]
  %s1 = inlined_call_operand.hbm [shape: f32[2,1024], index: 1, kind: output, shape index: {}]
  %s2 = sld [smem:[#allocation0]]
  $region3: #{tpu_custom_call.1} parent=0
    _
  %s4 = ssub.s32 1, %s2
  %s5 = scalar_select 0, %s4, %s2
  $region2: #{tpu_custom_call.1} parent=0
    #allocation2 [shape = 's32[1]{0}', space=sflag, size = 0x4, scoped, tag = 'scoped memory for tpu_custom_call.1']
    %s7 = sshll.u32 1, 14
    %s8 = sxor.u32 4294967295, %s7
    %s11 = sshll.u32 3, 24
    %s12 = sxor.u32 4294967295, %s11
    %s13 = sand.u32 0, %s12
    %s15 = sor.u32 %s13, 0
    %18 = dma.general %s0, 256, %s1, [#allocation2], [#allocation3], [#allocation4], %s15, 0
    %s19 = smul.u32 2, 1
    %s20 = smul.u32 %s19, 8
    %s21 = sshll.u32 %s20, 4
    %22 = dma.done [#allocation2], %s21

</llo_original>
